<compile_context>
chip_gen: v5e
topology: v5e:2x2
jax: 0.10.0
libtpu: 0.0.40
codegen_flags: <defaults>
</compile_context>

<pallas_src>
import functools
import math

import jax
import jax.numpy as jnp
from jax import lax
from jax.experimental import pallas as pl
from jax.experimental.pallas import tpu as pltpu


def _vision_rope_kernel(inv_freq_ref, offset_ref, out_ref, *, rows_per_fold):
    # out_ref:      (tile_m, lanes) with lanes = rows_per_fold * half_dim (mult. of 128)
    # inv_freq_ref: (1, lanes)  inv_freq tiled across the lane fold
    # offset_ref:   (1, lanes)  sub_row * inv_freq  (lane-only term)
    #
    # Logical mapping: out[p, l] = ((p_global * R) + l // half_dim) * inv_freq[l % half_dim]
    #                            = pos[p] * inv_freq_row[l] + offset_row[l]
    tile_m = out_ref.shape[0]
    block_row0 = pl.program_id(0) * tile_m
    fold_row = lax.broadcasted_iota(jnp.int32, (tile_m, 1), 0) + block_row0
    pos = fold_row.astype(jnp.float32) * float(rows_per_fold)        # (tile_m, 1)
    # Rank-1 broadcast multiply-add on the VPU; store is lane-dense (unmasked vst).
    out_ref[...] = pos * inv_freq_ref[...] + offset_ref[...]


def vision_rotary_embedding(seqlen: int, dim: int, theta: float = 10000.0) -> jax.Array:
    """Equivalent of VisionRotaryEmbedding(dim, theta).forward(seqlen)."""
    half_dim = (dim + 1) // 2  # == len(arange(0, dim, 2))

    # Fold R logical rows per stored row so the stored last dim is a multiple of 128.
    rows_per_fold = 128 // math.gcd(half_dim, 128)
    # Widen toward ~512 lanes when seqlen allows (bigger unmasked store bursts).
    while rows_per_fold * half_dim < 512 and rows_per_fold * 2 <= seqlen:
        rows_per_fold *= 2
    lanes = rows_per_fold * half_dim            # multiple of 128 by construction
    folded_rows = -(-seqlen // rows_per_fold)   # ceil

    # Balanced ~1 MiB output blocks (output is the only pipelined array, so
    # 2 x 1 MiB double-buffer is far under every chip's scoped-VMEM limit).
    out_bytes = folded_rows * lanes * 4
    num_blocks = max(1, -(-out_bytes // (1 << 20)))
    if num_blocks == 1 and out_bytes > (512 * 1024):
        num_blocks = 2                          # keep v7x's 2nd TensorCore busy
    if num_blocks == 1:
        tile_m = folded_rows                    # single full block (== array dim)
    else:
        tile_m = -(-folded_rows // num_blocks)  # balance first ...
        tile_m = -(-tile_m // 8) * 8            # ... then round to sublane multiple
        num_blocks = -(-folded_rows // tile_m)
    padded_folded = num_blocks * tile_m         # padding kept to < 8*num_blocks rows

    # Lane-only terms, computed once with the exact reference formula.
    inv_freq = 1.0 / (theta ** (jnp.arange(0, dim, 2, dtype=jnp.float32) / dim))
    sub_row = jnp.arange(rows_per_fold, dtype=jnp.float32)
    inv_freq_row = jnp.tile(inv_freq, rows_per_fold).reshape(1, lanes)
    offset_row = (sub_row[:, None] * inv_freq[None, :]).reshape(1, lanes)

    out_folded = pl.pallas_call(
        functools.partial(_vision_rope_kernel, rows_per_fold=rows_per_fold),
        out_shape=jax.ShapeDtypeStruct((padded_folded, lanes), jnp.float32),
        grid=(num_blocks,),
        in_specs=[
            pl.BlockSpec((1, lanes), lambda i: (0, 0)),   # constant block: fetched once
            pl.BlockSpec((1, lanes), lambda i: (0, 0)),
        ],
        out_specs=pl.BlockSpec((tile_m, lanes), lambda i: (i, 0)),
        compiler_params=pltpu.CompilerParams(
            dimension_semantics=("parallel",),            # shards blocks on v7x's 2 TCs
            vmem_limit_bytes=32 * 1024 * 1024,
        ),
        cost_estimate=pl.CostEstimate(
            flops=2 * padded_folded * lanes,
            transcendentals=0,
            bytes_accessed=padded_folded * lanes * 4 + 2 * lanes * 4,
        ),
    )(inv_freq_row, offset_row)

    # Unfold lanes back to (rows, half_dim).  The reshape is contiguity-preserving;
    # the [:seqlen] slice only materializes a copy when padding exists (kept small).
    return out_folded.reshape(padded_folded * rows_per_fold, half_dim)[:seqlen]


if __name__ == "__main__":
    # forward() takes only an integer seqlen; PRNGKey(0) kept for determinism
    # convention (no random tensors are needed by this module).
    _ = jax.random.PRNGKey(0)

    theta = 10000.0

    # Small config consistent with the module (rotary dim 32 -> half_dim 16).
    seqlen, dim = 8, 32
    freqs = jax.block_until_ready(vision_rotary_embedding(seqlen, dim, theta))
    inv_freq_ref = 1.0 / (theta ** (jnp.arange(0, dim, 2, dtype=jnp.float32) / dim))
    ref = jnp.arange(seqlen, dtype=jnp.float32)[:, None] * inv_freq_ref[None, :]
    assert freqs.shape == (seqlen, dim // 2)
    assert freqs.dtype == jnp.float32
    assert jnp.allclose(freqs, ref, rtol=1e-5, atol=1e-6)

    # Larger config: exercises lane folding with seqlen % R != 0, multi-block
    # balanced tiling, and a non-power-of-two half_dim (Qwen2-VL head_dim=80 -> 40).
    seqlen2, dim2 = 4100, 80
    freqs2 = jax.block_until_ready(vision_rotary_embedding(seqlen2, dim2, theta))
    inv2 = 1.0 / (theta ** (jnp.arange(0, dim2, 2, dtype=jnp.float32) / dim2))
    ref2 = jnp.arange(seqlen2, dtype=jnp.float32)[:, None] * inv2[None, :]
    assert freqs2.shape == (seqlen2, dim2 // 2)
    assert jnp.allclose(freqs2, ref2, rtol=1e-5, atol=1e-6)

    print("KERNEL_OK")
</pallas_src>

<mosaic_0001>
module attributes {stable_mosaic.version = 11 : i64} {
  func.func @_vision_rope_kernel(%arg0: i32, %arg1: memref<1x128xf32, #tpu.memory_space<vmem>>, %arg2: memref<1x128xf32, #tpu.memory_space<vmem>>, %arg3: memref<1x128xf32, #tpu.memory_space<vmem>>) attributes {dimension_semantics = [#tpu.dimension_semantics<parallel>], iteration_bounds = array<i64: 1>, scalar_prefetch = 0 : i64, scratch_operands = 0 : i64, tpu.core_type = #tpu.core_type<tc>, window_params = [{pipeline_mode = #tpu.pipeline_mode<synchronous>, transform_indices = @transform_0, window_bounds = array<i64: 1, 128>}, {pipeline_mode = #tpu.pipeline_mode<synchronous>, transform_indices = @transform_1, window_bounds = array<i64: 1, 128>}, {transform_indices = @transform_2, window_bounds = array<i64: 1, 128>}]} {
    %c1_i32 = arith.constant 1 : i32
    %0 = arith.muli %arg0, %c1_i32 : i32
    %1 = tpu.iota {dimensions = array<i32: 0>} : vector<1x1xi32>
    %2 = vector.broadcast %0 : i32 to vector<1x1xi32>
    %3 = arith.addi %1, %2 : vector<1x1xi32>
    %4 = arith.sitofp %3 : vector<1x1xi32> to vector<1x1xf32>
    %cst = arith.constant 8.000000e+00 : f32
    %5 = vector.broadcast %cst : f32 to vector<1x1xf32>
    %6 = arith.mulf %4, %5 : vector<1x1xf32>
    %c0 = arith.constant 0 : index
    %c0_0 = arith.constant 0 : index
    %7 = vector.load %arg1[%c0, %c0_0] : memref<1x128xf32, #tpu.memory_space<vmem>>, vector<1x128xf32>
    %8 = vector.broadcast %6 : vector<1x1xf32> to vector<1x128xf32>
    %9 = arith.mulf %8, %7 : vector<1x128xf32>
    %c0_1 = arith.constant 0 : index
    %c0_2 = arith.constant 0 : index
    %10 = vector.load %arg2[%c0_1, %c0_2] : memref<1x128xf32, #tpu.memory_space<vmem>>, vector<1x128xf32>
    %11 = arith.addf %9, %10 : vector<1x128xf32>
    %c0_3 = arith.constant 0 : index
    %c0_4 = arith.constant 0 : index
    %12 = vector.load %arg3[%c0_3, %c0_4] : memref<1x128xf32, #tpu.memory_space<vmem>>, vector<1x128xf32>
    tpu.vector_store %arg3[%c0_3, %c0_4], %11 {strides = array<i32>} : memref<1x128xf32, #tpu.memory_space<vmem>>, vector<1x128xf32>,
    return
  }
  func.func @transform_0(%arg0: i32) -> (i32, i32) {
    %c0_i32 = arith.constant 0 : i32
    %c0_i32_0 = arith.constant 0 : i32
    %c0_i32_1 = arith.constant 0 : i32
    return %c0_i32, %c0_i32_0 : i32, i32
  }
  func.func @transform_1(%arg0: i32) -> (i32, i32) {
    %c0_i32 = arith.constant 0 : i32
    %c0_i32_0 = arith.constant 0 : i32
    %c0_i32_1 = arith.constant 0 : i32
    return %c0_i32, %c0_i32_0 : i32, i32
  }
  func.func @transform_2(%arg0: i32) -> (i32, i32) {
    %c0_i32 = arith.constant 0 : i32
    %c0_i32_0 = arith.constant 0 : i32
    return %arg0, %c0_i32 : i32, i32
  }
}

</mosaic_0001>

<llo_original>
// kernel: tpu_custom_call.1
$region0: #{tpu_custom_call.1}
  #allocation0 [shape = 'u32[]', space=smem, size = 0x4, offset = 0x4, fixed_abs, tag = 'smem constant byte address 0x4 - core index']
  #allocation1 [shape = 'u32[72,128]{1,0:T(1,128)}', space=vmem, size = 0x9000, scoped, tag = 'internal scratch']
  %s0 = inlined_call_operand.hbm [shape: f32[1,128], index: 0, kind: input, shape index: {}]
  %s1 = inlined_call_operand.hbm [shape: f32[1,128], index: 1, kind: input, shape index: {}]
  %s2 = inlined_call_operand.hbm [shape: f32[1,128], index: 2, kind: output, shape index: {}]
  %s3 = sld [smem:[#allocation0]]
  $region26: #{tpu_custom_call.1} parent=0
    _
  %s5 = ssub.s32 1, %s3
  %s6 = scalar_select 0, %s5, %s3
  $region1: #{tpu_custom_call.1} parent=0
    #allocation2 [shape = 'u8[512]{0}', space=vmem, size = 0x400, scoped, tag = 'input window, operand 0, single buffered']
    #allocation3 [shape = 's32[1]{0}', space=sflag, size = 0x4, scoped, tag = 'scoped memory for tpu_custom_call.1']
    #allocation4 [shape = 's32[1]{0}', space=sflag, size = 0x4, scoped, tag = 'scoped memory for tpu_custom_call.1']
    #allocation5 [shape = 'u8[512]{0}', space=vmem, size = 0x400, scoped, tag = 'input window, operand 1, single buffered']
    #allocation6 [shape = 's32[1]{0}', space=sflag, size = 0x4, scoped, tag = 'scoped memory for tpu_custom_call.1']
    #allocation7 [shape = 'u8[512]{0}', space=vmem, size = 0x400, scoped, tag = 'output window, operand 0, single buffered']
    %7 = vsyncpa [#allocation3], 0
    %8 = vsyncpa [#allocation6], 0
    %9 = vsyncpa [#allocation4], 0
    // Predicated region
    $region2: #{tpu_custom_call.1} parent=1 // pred_check
      _
    $region3: #{tpu_custom_call.1} parent=1 // pred_check_branch
      %11 = sbr.rel (0) target = $region5
    $region4: #{tpu_custom_call.1} parent=1 // pred_region
      %13 = vsyncadd [#allocation3], 0
      %s15 = sshll.u32 %s0, 4
      %s16 = int_to_ptr.hbm [resolvable:$true] %s15
      %s17 = sshll.u32 [#allocation2], 4
      %s18 = int_to_ptr.vmem [resolvable:$true] %s17
      %20 = dma.hbm_to_vmem [thread:$0]  %s16, 16, %s18, [#allocation3]
    $region5: #{tpu_custom_call.1} parent=1 // pred_fallthru
      _
    // Predicated region
    $region6: #{tpu_custom_call.1} parent=1 // pred_check
      _
    $region7: #{tpu_custom_call.1} parent=1 // pred_check_branch
      %22 = sbr.rel (0) target = $region9
    $region8: #{tpu_custom_call.1} parent=1 // pred_region
      %24 = vsyncadd [#allocation6], 0
      %s26 = sshll.u32 %s1, 4
      %s27 = int_to_ptr.hbm [resolvable:$true] %s26
      %s28 = sshll.u32 [#allocation5], 4
      %s29 = int_to_ptr.vmem [resolvable:$true] %s28
      %31 = dma.hbm_to_vmem [thread:$0]  %s27, 16, %s29, [#allocation6]
    $region9: #{tpu_custom_call.1} parent=1 // pred_fallthru
      _
    // Predicated region
    $region10: #{tpu_custom_call.1} parent=1 // pred_check
      _
    $region11: #{tpu_custom_call.1} parent=1 // pred_check_branch
      %33 = sbr.rel (0) target = $region13
    $region12: #{tpu_custom_call.1} parent=1 // pred_region
      %35 = dma.done [#allocation3], 16
    $region13: #{tpu_custom_call.1} parent=1 // pred_fallthru
      _
    // Predicated region
    $region14: #{tpu_custom_call.1} parent=1 // pred_check
      _
    $region15: #{tpu_custom_call.1} parent=1 // pred_check_branch
      %37 = sbr.rel (0) target = $region17
    $region16: #{tpu_custom_call.1} parent=1 // pred_region
      %39 = dma.done [#allocation6], 16
    $region17: #{tpu_custom_call.1} parent=1 // pred_fallthru
      _
    %v40 = vlaneseq
    %v41 = vshrl.u32 %v40, 7
    %v42 = vstv 0
    %v43 = vadd.s32 %v41, %v42
    %v44 = vcvt.s32.f32 %v43
    %v45 = vmul.f32 %v44, 8.0
    %v46 = vld [vmem:[#allocation2] sm:$0x1]
    %v47 = vmul.f32 %v45, %v46
    %v48 = vld [vmem:[#allocation5] sm:$0x1]
    %v49 = vadd.f32 %v47, %v48
    %50 = vst [vmem:[#allocation7] sm:$0x1] %v49
    // Predicated region
    $region18: #{tpu_custom_call.1} parent=1 // pred_check
      _
    $region19: #{tpu_custom_call.1} parent=1 // pred_check_branch
      %52 = sbr.rel (0) target = $region21
    $region20: #{tpu_custom_call.1} parent=1 // pred_region
      %54 = vsyncadd [#allocation4], 0
      %s56 = sshll.u32 [#allocation7], 4
      %s57 = int_to_ptr.vmem [resolvable:$true] %s56
      %s58 = sshll.u32 %s2, 4
      %s59 = int_to_ptr.hbm [resolvable:$true] %s58
      %61 = dma.vmem_to_hbm [thread:$0]  %s57, 16, %s59, [#allocation4]
    $region21: #{tpu_custom_call.1} parent=1 // pred_fallthru
      _
    // Predicated region
    $region22: #{tpu_custom_call.1} parent=1 // pred_check
      _
    $region23: #{tpu_custom_call.1} parent=1 // pred_check_branch
      %63 = sbr.rel (0) target = $region25
    $region24: #{tpu_custom_call.1} parent=1 // pred_region
      %65 = dma.done [#allocation4], 16
    $region25: #{tpu_custom_call.1} parent=1 // pred_fallthru
      _
    %66 = vsyncpa [#allocation3], 1
    %67 = vsyncpa [#allocation6], 1
    %68 = vsyncpa [#allocation4], 1

</llo_original>
